<compile_context>
chip_gen: v5e
topology: v5e:2x2
jax: 0.10.0
libtpu: 0.0.40
codegen_flags: <defaults>
</compile_context>

<pallas_src>
import jax
import jax.numpy as jnp
from jax import lax
from jax.experimental import pallas as pl
from jax.experimental.pallas import tpu as pltpu

# Global hyper-params implied by the module's use of global n_features / n_out.
N_FEATURES = 32
N_OUT = 8
BATCH = 8


def _one_layer_kernel_t(x_ref, w_ref, b_ref, o_ref):
    # x_ref: (tile_b, n_features)   VMEM
    # w_ref: (n_out, n_features)    VMEM  (PyTorch nn.Linear layout, as-is)
    # b_ref: (n_out, 1)             VMEM  (bias as a column)
    # o_ref: (n_out, tile_b)        VMEM  <- lane-dense output (last dim % 128 == 0)
    #
    # y^T = W @ x^T : contract feature dims of W and x directly; the MXU takes
    # the transposed operand for free, no explicit transpose materialized.
    y = lax.dot_general(
        w_ref[...], x_ref[...],
        dimension_numbers=(((1,), (1,)), ((), ())),
        preferred_element_type=jnp.float32,
    )
    y = y + b_ref[...]                                   # broadcast bias per row
    o_ref[...] = (jnp.maximum(y, 0.0) + 0.001).astype(o_ref.dtype)


def _cost_estimate(batch, n_features, n_out):
    return pl.CostEstimate(
        flops=2 * batch * n_features * n_out + 2 * batch * n_out,
        transcendentals=0,
        bytes_accessed=4 * (batch * n_features
                            + n_out * n_features
                            + n_out
                            + batch * n_out),
    )


def one_layer_regression_forward(x, weight, bias, *, batch_tile=16384):
    """relu(linear(x)) + 0.001, matching the PyTorch module.

    x:      (batch, n_features) float32
    weight: (n_out, n_features) float32 (PyTorch nn.Linear layout, passed as-is)
    bias:   (n_out,)            float32
    """
    batch, n_features = x.shape
    n_out, n_features_w = weight.shape
    assert n_features_w == n_features
    b_col = bias.reshape(n_out, 1)  # column vector, broadcasts over batch lanes
    cost = _cost_estimate(batch, n_features, n_out)

    if batch <= batch_tile:
        # Single-shot path: whole problem (< ~2 MiB) in VMEM, no grid / no
        # pipeline machinery. Dominated by fixed launch + DMA cost at tiny
        # shapes; no in-kernel tweak changes that.
        out_t = pl.pallas_call(
            _one_layer_kernel_t,
            out_shape=jax.ShapeDtypeStruct((n_out, batch), x.dtype),
            in_specs=[
                pl.BlockSpec(memory_space=pltpu.MemorySpace.VMEM),
                pl.BlockSpec(memory_space=pltpu.MemorySpace.VMEM),
                pl.BlockSpec(memory_space=pltpu.MemorySpace.VMEM),
            ],
            out_specs=pl.BlockSpec(memory_space=pltpu.MemorySpace.VMEM),
            cost_estimate=cost,
        )(x, weight, b_col)
        return out_t.T

    # Grid path (large batch). Pad to a multiple of batch_tile so there is no
    # whole-array-in-VMEM fallback for ragged sizes; grid length >= 2 here, so
    # "parallel" actually shards across v7x's two TensorCores.
    assert batch_tile % 128 == 0, "batch_tile must be lane-aligned (multiple of 128)"
    num_tiles = pl.cdiv(batch, batch_tile)
    padded = num_tiles * batch_tile
    if padded != batch:
        x = jnp.pad(x, ((0, padded - batch), (0, 0)))

    out_t = pl.pallas_call(
        _one_layer_kernel_t,
        out_shape=jax.ShapeDtypeStruct((n_out, padded), x.dtype),
        grid=(num_tiles,),
        in_specs=[
            pl.BlockSpec((batch_tile, n_features), lambda i: (i, 0)),
            # Weight / bias are grid-invariant (index (0, 0)); Pallas skips the
            # re-fetch DMA when the block index does not change.
            pl.BlockSpec((n_out, n_features), lambda i: (0, 0)),
            pl.BlockSpec((n_out, 1), lambda i: (0, 0)),
        ],
        out_specs=pl.BlockSpec((n_out, batch_tile), lambda i: (0, i)),
        compiler_params=pltpu.CompilerParams(
            dimension_semantics=("parallel",)),
        cost_estimate=cost,
    )(x, weight, b_col)

    out = out_t.T
    if padded != batch:
        out = out[:batch]
    return out


if __name__ == "__main__":
    key = jax.random.PRNGKey(0)
    kx, kw, kb, kx2 = jax.random.split(key, 4)

    # Deterministic synthetic parameters (shapes from nn.Linear(n_features, n_out)).
    weight = jax.random.normal(kw, (N_OUT, N_FEATURES), dtype=jnp.float32) * 0.1
    bias = jax.random.normal(kb, (N_OUT,), dtype=jnp.float32) * 0.1

    # Small single-shot case (no grid).
    x_small = jax.random.normal(kx, (BATCH, N_FEATURES), dtype=jnp.float32)
    out_small = jax.block_until_ready(
        one_layer_regression_forward(x_small, weight, bias))
    ref_small = jnp.maximum(x_small @ weight.T + bias, 0.0) + 0.001
    assert out_small.shape == (BATCH, N_OUT)
    assert jnp.allclose(out_small, ref_small, atol=1e-5, rtol=1e-5)

    # Grid-path case: ragged batch (not divisible by the tile) to exercise
    # padding + the pipelined, lane-dense-output path.
    big_batch = 2500
    x_big = jax.random.normal(kx2, (big_batch, N_FEATURES), dtype=jnp.float32)
    out_big = jax.block_until_ready(
        one_layer_regression_forward(x_big, weight, bias, batch_tile=1024))
    ref_big = jnp.maximum(x_big @ weight.T + bias, 0.0) + 0.001
    assert out_big.shape == (big_batch, N_OUT)
    assert jnp.allclose(out_big, ref_big, atol=1e-5, rtol=1e-5)

    print("KERNEL_OK")
</pallas_src>

<mosaic_0001>
module attributes {stable_mosaic.version = 11 : i64} {
  func.func @_one_layer_kernel_t(%arg0: memref<8x32xf32, #tpu.memory_space<vmem>>, %arg1: memref<8x32xf32, #tpu.memory_space<vmem>>, %arg2: memref<8x1xf32, #tpu.memory_space<vmem>>, %arg3: memref<8x8xf32, #tpu.memory_space<vmem>>) attributes {dimension_semantics = [], scalar_prefetch = 0 : i64, scratch_operands = 0 : i64, tpu.core_type = #tpu.core_type<tc>} {
    %c0 = arith.constant 0 : index
    %c0_0 = arith.constant 0 : index
    %0 = vector.load %arg1[%c0, %c0_0] : memref<8x32xf32, #tpu.memory_space<vmem>>, vector<8x32xf32>
    %c0_1 = arith.constant 0 : index
    %c0_2 = arith.constant 0 : index
    %1 = vector.load %arg0[%c0_1, %c0_2] : memref<8x32xf32, #tpu.memory_space<vmem>>, vector<8x32xf32>
    %cst = arith.constant dense<0.000000e+00> : vector<8x8xf32>
    %2 = tpu.matmul %0, %1, %cst {dimension_numbers = #tpu.dot_dimension_numbers<[1], [1], [0], [0], [0, 0, 1, 0], [], []>} : vector<8x32xf32>, vector<8x32xf32>, vector<8x8xf32> -> vector<8x8xf32>
    %c0_3 = arith.constant 0 : index
    %c0_4 = arith.constant 0 : index
    %3 = vector.load %arg2[%c0_3, %c0_4] : memref<8x1xf32, #tpu.memory_space<vmem>>, vector<8x1xf32>
    %4 = vector.broadcast %3 : vector<8x1xf32> to vector<8x8xf32>
    %5 = arith.addf %2, %4 : vector<8x8xf32>
    %cst_5 = arith.constant 0.000000e+00 : f32
    %6 = vector.broadcast %cst_5 : f32 to vector<8x8xf32>
    %7 = arith.maximumf %5, %6 : vector<8x8xf32>
    %cst_6 = arith.constant 1.000000e-03 : f32
    %8 = vector.broadcast %cst_6 : f32 to vector<8x8xf32>
    %9 = arith.addf %7, %8 : vector<8x8xf32>
    %c0_7 = arith.constant 0 : index
    %c0_8 = arith.constant 0 : index
    %10 = vector.load %arg3[%c0_7, %c0_8] : memref<8x8xf32, #tpu.memory_space<vmem>>, vector<8x8xf32>
    tpu.vector_store %arg3[%c0_7, %c0_8], %9 {strides = array<i32>} : memref<8x8xf32, #tpu.memory_space<vmem>>, vector<8x8xf32>,
    return
  }
}

</mosaic_0001>

<llo_original>
// kernel: tpu_custom_call.1
$region0: #{tpu_custom_call.1}
  #allocation0 [shape = 'u32[]', space=smem, size = 0x4, offset = 0x4, fixed_abs, tag = 'smem constant byte address 0x4 - core index']
  #allocation1 [shape = 'u32[72,128]{1,0:T(1,128)}', space=vmem, size = 0x9000, scoped, tag = 'internal scratch']
  %s0 = inlined_call_operand.vmem [shape: f32[8,32], index: 0, kind: input, shape index: {}]
  %s1 = inlined_call_operand.hbm [shape: f32[8,32], index: 1, kind: input, shape index: {}]
  %s2 = inlined_call_operand.vmem [shape: f32[8,1], index: 2, kind: input, shape index: {}]
  %s3 = inlined_call_operand.hbm [shape: f32[8,8], index: 3, kind: output, shape index: {}]
  %s4 = sld [smem:[#allocation0]]
  $region26: #{tpu_custom_call.1} parent=0
    _
  %s6 = ssub.s32 1, %s4
  %s7 = scalar_select 0, %s6, %s4
  $region1: #{tpu_custom_call.1} parent=0
    #allocation2 [shape = 'u8[4096]{0}', space=vmem, size = 0x1000, scoped, tag = 'input window, operand 1, single buffered']
    #allocation3 [shape = 's32[1]{0}', space=sflag, size = 0x4, scoped, tag = 'scoped memory for tpu_custom_call.1']
    #allocation4 [shape = 's32[1]{0}', space=sflag, size = 0x4, scoped, tag = 'scoped memory for tpu_custom_call.1']
    #allocation5 [shape = 'u8[4096]{0}', space=vmem, size = 0x1000, scoped, tag = 'output window, operand 0, single buffered']
    %8 = vsyncpa [#allocation3], 0
    %9 = vsyncpa [#allocation4], 0
    // Predicated region
    $region2: #{tpu_custom_call.1} parent=1 // pred_check
      _
    $region3: #{tpu_custom_call.1} parent=1 // pred_check_branch
      %11 = sbr.rel (0) target = $region5
    $region4: #{tpu_custom_call.1} parent=1 // pred_region
      _
    $region5: #{tpu_custom_call.1} parent=1 // pred_fallthru
      _
    // Predicated region
    $region6: #{tpu_custom_call.1} parent=1 // pred_check
      _
    $region7: #{tpu_custom_call.1} parent=1 // pred_check_branch
      %13 = sbr.rel (0) target = $region9
    $region8: #{tpu_custom_call.1} parent=1 // pred_region
      %15 = vsyncadd [#allocation3], 0
      %s17 = sshll.u32 %s1, 4
      %s18 = int_to_ptr.hbm [resolvable:$true] %s17
      %s19 = sshll.u32 [#allocation2], 4
      %s20 = int_to_ptr.vmem [resolvable:$true] %s19
      %22 = dma.hbm_to_vmem [thread:$0]  %s18, 128, %s20, [#allocation3]
    $region9: #{tpu_custom_call.1} parent=1 // pred_fallthru
      _
    // Predicated region
    $region10: #{tpu_custom_call.1} parent=1 // pred_check
      _
    $region11: #{tpu_custom_call.1} parent=1 // pred_check_branch
      %24 = sbr.rel (0) target = $region13
    $region12: #{tpu_custom_call.1} parent=1 // pred_region
      _
    $region13: #{tpu_custom_call.1} parent=1 // pred_fallthru
      _
    // Predicated region
    $region14: #{tpu_custom_call.1} parent=1 // pred_check
      _
    $region15: #{tpu_custom_call.1} parent=1 // pred_check_branch
      %26 = sbr.rel (0) target = $region17
    $region16: #{tpu_custom_call.1} parent=1 // pred_region
      %28 = dma.done [#allocation3], 128
    $region17: #{tpu_custom_call.1} parent=1 // pred_fallthru
      _
    %v29 = vld [vmem:[#allocation2] sm:$0xff]
    %v30 = vld [vmem:[%s0] sm:$0xff]
    %v31 = vld [vmem:[%s2] sm:$0xff]
    %33 = vset.pattern.permute.xlu0 0
    %34 = vperm.xlu0 %33, %v31
    %v35 = vpop.permute.xlu0 %34
    %vm37 = vcmask 261120
    %v39 = vsel %vm37, %v29, 0
    %v42 = vsel %vm37, %v30, 0
    %44 = vmatpush.xpose.msra.mxu0 0.0
    %45 = vmatpush.xpose.msra.mxu0 0.0
    %46 = vmatpush.xpose.msra.mxu0 0.0
    %47 = vmatpush.xpose.msra.mxu0 0.0
    %48 = vmatpush.xpose.msra.mxu0 0.0
    %49 = vmatpush.xpose.msra.mxu0 0.0
    %50 = vmatpush.xpose.msra.mxu0 0.0
    %51 = vmatpush.xpose.msra.mxu0 0.0
    %52 = vmatpush.xpose.msra.mxu0 0.0
    %53 = vmatpush.xpose.msra.mxu0 0.0
    %54 = vmatpush.xpose.msra.mxu0 0.0
    %55 = vmatpush.xpose.msra.mxu0 0.0
    %56 = vmatpush.xpose.msra.mxu0 0.0
    %57 = vmatpush.xpose.msra.mxu0 0.0
    %58 = vmatpush.xpose.msra.mxu0 0.0
    %59 = vmatpush.xpose.msra.mxu0 %v42
    %60 = vmatmul.f32.gmra.mxu0 %v39
    %v61 = vpop.f32.mrf.mxu0
    %v62 = vadd.f32 %v35, %v61
    %63 = vdwg.mxu0
    %v64 = vmax.f32 %v62, 0.0
    %v65 = vadd.f32 %v64, 0.001
    %vm66 = vcmask 64512
    %67 = vst.msk [vmem:[#allocation5] sm:$0xff] %vm66, %v65
    // Predicated region
    $region18: #{tpu_custom_call.1} parent=1 // pred_check
      _
    $region19: #{tpu_custom_call.1} parent=1 // pred_check_branch
      %69 = sbr.rel (0) target = $region21
    $region20: #{tpu_custom_call.1} parent=1 // pred_region
      %71 = vsyncadd [#allocation4], 0
      %s73 = sshll.u32 [#allocation5], 4
      %s74 = int_to_ptr.vmem [resolvable:$true] %s73
      %s75 = sshll.u32 %s3, 4
      %s76 = int_to_ptr.hbm [resolvable:$true] %s75
      %78 = dma.vmem_to_hbm [thread:$0]  %s74, 128, %s76, [#allocation4]
    $region21: #{tpu_custom_call.1} parent=1 // pred_fallthru
      _
    // Predicated region
    $region22: #{tpu_custom_call.1} parent=1 // pred_check
      _
    $region23: #{tpu_custom_call.1} parent=1 // pred_check_branch
      %80 = sbr.rel (0) target = $region25
    $region24: #{tpu_custom_call.1} parent=1 // pred_region
      %82 = dma.done [#allocation4], 128
    $region25: #{tpu_custom_call.1} parent=1 // pred_fallthru
      _
    %83 = vsyncpa [#allocation3], 1
    %84 = vsyncpa [#allocation4], 1

</llo_original>
